<compile_context>
chip_gen: v5e
topology: v5e:2x2
jax: 0.10.0
libtpu: 0.0.40
codegen_flags: <defaults>
</compile_context>

<pallas_src>
import jax
import jax.numpy as jnp
from jax import lax
from jax.experimental import pallas as pl
from jax.experimental.pallas import tpu as pltpu

IGNORE_INDEX = -100


def _round_up(x, m):
    return ((x + m - 1) // m) * m


def _vmem_capacity_bytes():
    """Physical VMEM of the attached TPU generation (conservative fallback)."""
    try:
        info = pltpu.get_tpu_info()
        cap = getattr(info, "vmem_capacity_bytes", None)
        if cap:
            return int(cap)
    except Exception:
        pass
    return 64 * 1024 * 1024          # v7x is the smallest (64 MiB per core)


def _choose_tiles(smaller, num_classes, itemsize, vmem_cap):
    """Pick (batch_tile, class_chunk, sublane) generation-aware."""
    # sublane pack of the logits dtype: 8 for f32, 16 for bf16, 32 for int8/fp8
    sublane = max(8, 32 // max(1, itemsize))
    if num_classes <= 4096:
        tc = num_classes             # one chunk covers the full class dim
    else:
        tc = 2048                    # lane-aligned (multiple of 128) chunk

    # double-buffered pred tiles: <= 1/4 of physical VMEM, never above 32 MiB
    budget = min(vmem_cap // 4, 32 * 1024 * 1024)
    tb = budget // max(1, 2 * tc * itemsize)
    tb = max(sublane, (tb // sublane) * sublane)
    tb = min(tb, 1024)
    # keep >= 2 batch tiles when possible so the "parallel" axis can be split
    # across both v7x TensorCores (free on other gens, one extra grid step)
    half = _round_up(max(1, -(-smaller // 2)), sublane)
    tb = min(tb, max(sublane, half))
    tb = min(tb, _round_up(smaller, sublane))
    return tb, tc, sublane


def align_pred_label_batch_size(pred, label):
    """Plain-JAX mirror of LossFunc.align_pred_label_batch_size."""
    pred_size, label_size = pred.shape[0], label.shape[0]
    if pred_size == label_size:
        return pred, label
    smaller = min(pred_size, label_size)
    return pred[:smaller], label[:smaller]


def loss_func_forward(pred, label, ignore_index=IGNORE_INDEX,
                      batch_tile=None, class_chunk=None):
    """Masked mean cross-entropy with ignore_index.

    Batch alignment is done by bounding the kernel grid to the smaller batch
    size (plus an in-kernel row mask) instead of slicing pred in HBM.
    """
    smaller = min(pred.shape[0], label.shape[0])
    num_classes = pred.shape[1]
    label2d = label.astype(jnp.int32).reshape(label.shape[0], 1)

    itemsize = jnp.dtype(pred.dtype).itemsize
    vmem_cap = _vmem_capacity_bytes()
    tb, tc, _sublane = _choose_tiles(smaller, num_classes, itemsize, vmem_cap)
    if batch_tile is not None:
        tb = batch_tile
    if class_chunk is not None:
        tc = class_chunk
    n_bt = pl.cdiv(smaller, tb)
    n_ct = pl.cdiv(num_classes, tc)
    has_tail = (num_classes % tc) != 0

    def kernel(pred_ref, label_ref, out_ref, m_ref, s_ref, pk_ref):
        i = pl.program_id(0)          # batch tile   ("parallel")
        k = pl.program_id(1)          # class chunk  ("arbitrary", innermost)

        @pl.when(k == 0)
        def _():
            m_ref[...] = jnp.full_like(m_ref, -jnp.inf)
            s_ref[...] = jnp.zeros_like(s_ref)
            pk_ref[...] = jnp.zeros_like(pk_ref)

        logits = pred_ref[...]                                 # [tb, tc] native
        labels = label_ref[...]                                # [tb, 1] int32

        # chunk-local lane index (grid-invariant -> hoistable by the compiler)
        col_local = jax.lax.broadcasted_iota(jnp.int32, (tb, tc), 1)

        # --- label pick in the native dtype (exactly one non-zero per row
        #     across all chunks, so bf16 sum is exact); scalar-shifted labels
        #     instead of a per-element global-iota add.
        lbl_local = labels - k * tc                            # [tb, 1]
        pick = jnp.sum(jnp.where(col_local == lbl_local, logits,
                                 jnp.zeros_like(logits)),
                       axis=-1, keepdims=True).astype(jnp.float32)
        pk_ref[...] += pick

        # --- online (streaming) logsumexp; tail columns only exist (and are
        #     masked to -inf) on the final chunk.
        x = logits.astype(jnp.float32)
        if has_tail:
            lim = num_classes - k * tc                         # scalar
            x = lax.cond(
                k == n_ct - 1,
                lambda v: jnp.where(col_local < lim, v, -jnp.inf),
                lambda v: v,
                x)
        m_prev = m_ref[...]
        m_new = jnp.maximum(m_prev, jnp.max(x, axis=-1, keepdims=True))
        s_ref[...] = (s_ref[...] * jnp.exp(m_prev - m_new)
                      + jnp.sum(jnp.exp(x - m_new), axis=-1, keepdims=True))
        m_ref[...] = m_new

        @pl.when(k == n_ct - 1)
        def _():
            row = jax.lax.broadcasted_iota(jnp.int32, (tb, 1), 0) + i * tb
            valid = (labels != ignore_index) & (row < smaller)  # [tb, 1]
            lse = m_ref[...] + jnp.log(s_ref[...])
            per_row = jnp.where(valid, lse - pk_ref[...], 0.0)
            total = jnp.sum(per_row)
            count = jnp.sum(valid.astype(jnp.float32))
            # full (8,128) slab -> unmasked store; sum in sublane 0, count in 1
            sub = jax.lax.broadcasted_iota(jnp.int32, (1, 8, 128), 1)
            out_ref[...] = jnp.where(sub == 0, total,
                                     jnp.where(sub == 1, count, 0.0))

    # Generation-aware scoped-VMEM limit: only raised when the tiles need it,
    # derived from the actual estimate and capped at 5/8 of physical VMEM.
    est_bytes = (2 * tb * tc * itemsize     # pred double buffer
                 + 2 * tb * 4               # label double buffer
                 + 3 * tb * 4               # m / s / pk scratch
                 + 2 * 8 * 128 * 4)         # output double buffer
    cp_kwargs = dict(dimension_semantics=("parallel", "arbitrary"))
    if est_bytes > 8 * 1024 * 1024:
        cp_kwargs["vmem_limit_bytes"] = int(
            min(est_bytes * 3 // 2 + (2 << 20), vmem_cap * 5 // 8))

    partials = pl.pallas_call(
        kernel,
        out_shape=jax.ShapeDtypeStruct((n_bt, 8, 128), jnp.float32),
        grid_spec=pltpu.PrefetchScalarGridSpec(
            num_scalar_prefetch=0,
            grid=(n_bt, n_ct),
            in_specs=[
                pl.BlockSpec((tb, tc), lambda i, k: (i, k)),   # pred (native dtype)
                pl.BlockSpec((tb, 1), lambda i, k: (i, 0)),    # labels
            ],
            out_specs=pl.BlockSpec((1, 8, 128), lambda i, k: (i, 0, 0)),
            scratch_shapes=[pltpu.VMEM((tb, 1), jnp.float32)] * 3,
        ),
        compiler_params=pltpu.CompilerParams(**cp_kwargs),
    )(pred, label2d)

    total = jnp.sum(partials[:, 0, 0])
    count = jnp.sum(partials[:, 1, 0])
    # TODO(synk): PyTorch mean-reduction returns NaN when every row is ignored;
    #             we return 0.0 instead (max(count, 1) guard).
    return total / jnp.maximum(count, 1.0)


def _ref_loss(pred, label):
    """Pure-JAX reference (masked mean cross-entropy)."""
    p, l = align_pred_label_batch_size(pred, label)
    p = p.astype(jnp.float32)
    lse = jax.nn.logsumexp(p, axis=-1)
    picked = jnp.take_along_axis(
        p, jnp.clip(l, 0, p.shape[1] - 1)[:, None], axis=-1)[:, 0]
    mask = (l != IGNORE_INDEX).astype(jnp.float32)
    return jnp.sum((lse - picked) * mask) / jnp.maximum(jnp.sum(mask), 1.0)


if __name__ == "__main__":
    key = jax.random.PRNGKey(0)
    k1, k2, k3, k4, k5 = jax.random.split(key, 5)

    # --- Test 1: mismatched batch sizes + ignored rows (f32 logits) ---------
    B_PRED, B_LABEL, C = 10, 8, 32
    pred = jax.random.normal(k1, (B_PRED, C), dtype=jnp.float32)
    label = jax.random.randint(k2, (B_LABEL,), 0, C, dtype=jnp.int32)
    label = label.at[0].set(IGNORE_INDEX).at[5].set(IGNORE_INDEX)

    loss = loss_func_forward(pred, label)
    jax.block_until_ready(loss)
    ref = _ref_loss(pred, label)
    assert jnp.allclose(loss, ref, rtol=1e-4, atol=1e-4), (loss, ref)

    # --- Test 2: multi-chunk class axis with a tail (online-logsumexp + the
    #             gated lax.cond tail-mask path) -----------------------------
    B2, C2 = 8, 288                       # 288 not a multiple of the 128 chunk
    pred2 = jax.random.normal(k3, (B2, C2), dtype=jnp.float32)
    label2 = jax.random.randint(k4, (B2,), 0, C2, dtype=jnp.int32)
    label2 = label2.at[3].set(IGNORE_INDEX)

    loss2 = loss_func_forward(pred2, label2, class_chunk=128)
    jax.block_until_ready(loss2)
    ref2 = _ref_loss(pred2, label2)
    assert jnp.allclose(loss2, ref2, rtol=1e-4, atol=1e-4), (loss2, ref2)

    # --- Test 3: bf16 logits stay bf16 on the wire and in the pick path -----
    pred3 = jax.random.normal(k5, (8, 32), dtype=jnp.float32).astype(jnp.bfloat16)
    label3 = label  # reuse (size 8, with ignores)
    loss3 = loss_func_forward(pred3, label3)
    jax.block_until_ready(loss3)
    ref3 = _ref_loss(pred3.astype(jnp.float32), label3)
    assert jnp.allclose(loss3, ref3, rtol=1e-3, atol=1e-3), (loss3, ref3)

    print("KERNEL_OK")
</pallas_src>

<mosaic_0001>
module attributes {stable_mosaic.version = 11 : i64} {
  func.func @kernel(%arg0: i32, %arg1: i32, %arg2: memref<8x32xf32, #tpu.memory_space<vmem>>, %arg3: memref<8x1xi32, #tpu.memory_space<vmem>>, %arg4: memref<1x8x128xf32, #tpu.memory_space<vmem>>, %arg5: memref<8x1xf32, #tpu.memory_space<vmem>>, %arg6: memref<8x1xf32, #tpu.memory_space<vmem>>, %arg7: memref<8x1xf32, #tpu.memory_space<vmem>>) attributes {dimension_semantics = [#tpu.dimension_semantics<parallel>, #tpu.dimension_semantics<arbitrary>], iteration_bounds = array<i64: 1, 1>, scalar_prefetch = 0 : i64, scratch_operands = 3 : i64, tpu.core_type = #tpu.core_type<tc>, window_params = [{transform_indices = @transform_0, window_bounds = array<i64: 8, 32>}, {transform_indices = @transform_1, window_bounds = array<i64: 8, 1>}, {transform_indices = @transform_2, window_bounds = array<i64: 1, 8, 128>}]} {
    %c0_i32 = arith.constant 0 : i32
    %0 = arith.cmpi eq, %arg1, %c0_i32 : i32
    %1 = arith.extui %0 : i1 to i32
    %c0_i32_0 = arith.constant 0 : i32
    %2 = arith.cmpi ne, %1, %c0_i32_0 : i32
    scf.if %2 {
      %cst_21 = arith.constant 0xFF800000 : f32
      %37 = vector.broadcast %cst_21 : f32 to vector<8x1xf32>
      %c0_22 = arith.constant 0 : index
      %c0_23 = arith.constant 0 : index
      %38 = vector.load %arg5[%c0_22, %c0_23] : memref<8x1xf32, #tpu.memory_space<vmem>>, vector<8x1xf32>
      tpu.vector_store %arg5[%c0_22, %c0_23], %37 {strides = array<i32>} : memref<8x1xf32, #tpu.memory_space<vmem>>, vector<8x1xf32>,
      %cst_24 = arith.constant 0.000000e+00 : f32
      %39 = vector.broadcast %cst_24 : f32 to vector<8x1xf32>
      %c0_25 = arith.constant 0 : index
      %c0_26 = arith.constant 0 : index
      %40 = vector.load %arg6[%c0_25, %c0_26] : memref<8x1xf32, #tpu.memory_space<vmem>>, vector<8x1xf32>
      tpu.vector_store %arg6[%c0_25, %c0_26], %39 {strides = array<i32>} : memref<8x1xf32, #tpu.memory_space<vmem>>, vector<8x1xf32>,
      %cst_27 = arith.constant 0.000000e+00 : f32
      %41 = vector.broadcast %cst_27 : f32 to vector<8x1xf32>
      %c0_28 = arith.constant 0 : index
      %c0_29 = arith.constant 0 : index
      %42 = vector.load %arg7[%c0_28, %c0_29] : memref<8x1xf32, #tpu.memory_space<vmem>>, vector<8x1xf32>
      tpu.vector_store %arg7[%c0_28, %c0_29], %41 {strides = array<i32>} : memref<8x1xf32, #tpu.memory_space<vmem>>, vector<8x1xf32>,
    } else {
    }
    %c0 = arith.constant 0 : index
    %c0_1 = arith.constant 0 : index
    %3 = vector.load %arg2[%c0, %c0_1] : memref<8x32xf32, #tpu.memory_space<vmem>>, vector<8x32xf32>
    %c0_2 = arith.constant 0 : index
    %c0_3 = arith.constant 0 : index
    %4 = vector.load %arg3[%c0_2, %c0_3] : memref<8x1xi32, #tpu.memory_space<vmem>>, vector<8x1xi32>
    %5 = tpu.iota {dimensions = array<i32: 1>} : vector<8x32xi32>
    %c32_i32 = arith.constant 32 : i32
    %6 = arith.muli %arg1, %c32_i32 : i32
    %7 = vector.broadcast %6 : i32 to vector<8x1xi32>
    %8 = arith.subi %4, %7 : vector<8x1xi32>
    %9 = vector.broadcast %8 : vector<8x1xi32> to vector<8x32xi32>
    %10 = arith.cmpi eq, %5, %9 : vector<8x32xi32>
    %cst = arith.constant 0.000000e+00 : f32
    %11 = vector.broadcast %cst : f32 to vector<8x32xf32>
    %12 = arith.select %10, %3, %11 : vector<8x32xi1>, vector<8x32xf32>
    %cst_4 = arith.constant dense<0.000000e+00> : vector<8xf32>
    %13 = vector.multi_reduction <add>, %12, %cst_4 [1] : vector<8x32xf32> to vector<8xf32>
    %14 = vector.shape_cast %13 : vector<8xf32> to vector<8x1xf32>
    %c0_5 = arith.constant 0 : index
    %c0_6 = arith.constant 0 : index
    %15 = vector.load %arg7[%c0_5, %c0_6] : memref<8x1xf32, #tpu.memory_space<vmem>>, vector<8x1xf32>
    %16 = arith.addf %15, %14 : vector<8x1xf32>
    %c0_7 = arith.constant 0 : index
    %c0_8 = arith.constant 0 : index
    %17 = vector.load %arg7[%c0_7, %c0_8] : memref<8x1xf32, #tpu.memory_space<vmem>>, vector<8x1xf32>
    tpu.vector_store %arg7[%c0_7, %c0_8], %16 {strides = array<i32>} : memref<8x1xf32, #tpu.memory_space<vmem>>, vector<8x1xf32>,
    %c0_9 = arith.constant 0 : index
    %c0_10 = arith.constant 0 : index
    %18 = vector.load %arg5[%c0_9, %c0_10] : memref<8x1xf32, #tpu.memory_space<vmem>>, vector<8x1xf32>
    %cst_11 = arith.constant dense<0xFF800000> : vector<8xf32>
    %19 = vector.multi_reduction <maximumf>, %3, %cst_11 [1] : vector<8x32xf32> to vector<8xf32>
    %20 = vector.shape_cast %19 : vector<8xf32> to vector<8x1xf32>
    %21 = arith.maximumf %18, %20 : vector<8x1xf32>
    %c0_12 = arith.constant 0 : index
    %c0_13 = arith.constant 0 : index
    %22 = vector.load %arg6[%c0_12, %c0_13] : memref<8x1xf32, #tpu.memory_space<vmem>>, vector<8x1xf32>
    %23 = arith.subf %18, %21 : vector<8x1xf32>
    %24 = math.exp %23 : vector<8x1xf32>
    %25 = arith.mulf %22, %24 : vector<8x1xf32>
    %26 = vector.broadcast %21 : vector<8x1xf32> to vector<8x32xf32>
    %27 = arith.subf %3, %26 : vector<8x32xf32>
    %28 = math.exp %27 : vector<8x32xf32>
    %cst_14 = arith.constant dense<0.000000e+00> : vector<8xf32>
    %29 = vector.multi_reduction <add>, %28, %cst_14 [1] : vector<8x32xf32> to vector<8xf32>
    %30 = vector.shape_cast %29 : vector<8xf32> to vector<8x1xf32>
    %31 = arith.addf %25, %30 : vector<8x1xf32>
    %c0_15 = arith.constant 0 : index
    %c0_16 = arith.constant 0 : index
    %32 = vector.load %arg6[%c0_15, %c0_16] : memref<8x1xf32, #tpu.memory_space<vmem>>, vector<8x1xf32>
    tpu.vector_store %arg6[%c0_15, %c0_16], %31 {strides = array<i32>} : memref<8x1xf32, #tpu.memory_space<vmem>>, vector<8x1xf32>,
    %c0_17 = arith.constant 0 : index
    %c0_18 = arith.constant 0 : index
    %33 = vector.load %arg5[%c0_17, %c0_18] : memref<8x1xf32, #tpu.memory_space<vmem>>, vector<8x1xf32>
    tpu.vector_store %arg5[%c0_17, %c0_18], %21 {strides = array<i32>} : memref<8x1xf32, #tpu.memory_space<vmem>>, vector<8x1xf32>,
    %c0_i32_19 = arith.constant 0 : i32
    %34 = arith.cmpi eq, %arg1, %c0_i32_19 : i32
    %35 = arith.extui %34 : i1 to i32
    %c0_i32_20 = arith.constant 0 : i32
    %36 = arith.cmpi ne, %35, %c0_i32_20 : i32
    scf.if %36 {
      %37 = tpu.iota {dimensions = array<i32: 0>} : vector<8x1xi32>
      %c8_i32 = arith.constant 8 : i32
      %38 = arith.muli %arg0, %c8_i32 : i32
      %39 = vector.broadcast %38 : i32 to vector<8x1xi32>
      %40 = arith.addi %37, %39 : vector<8x1xi32>
      %c-100_i32 = arith.constant -100 : i32
      %41 = vector.broadcast %c-100_i32 : i32 to vector<8x1xi32>
      %42 = arith.cmpi ne, %4, %41 : vector<8x1xi32>
      %c8_i32_21 = arith.constant 8 : i32
      %43 = vector.broadcast %c8_i32_21 : i32 to vector<8x1xi32>
      %44 = arith.cmpi slt, %40, %43 : vector<8x1xi32>
      %45 = arith.andi %42, %44 : vector<8x1xi1>
      %c0_22 = arith.constant 0 : index
      %c0_23 = arith.constant 0 : index
      %46 = vector.load %arg5[%c0_22, %c0_23] : memref<8x1xf32, #tpu.memory_space<vmem>>, vector<8x1xf32>
      %c0_24 = arith.constant 0 : index
      %c0_25 = arith.constant 0 : index
      %47 = vector.load %arg6[%c0_24, %c0_25] : memref<8x1xf32, #tpu.memory_space<vmem>>, vector<8x1xf32>
      %48 = math.log %47 : vector<8x1xf32>
      %49 = arith.addf %46, %48 : vector<8x1xf32>
      %c0_26 = arith.constant 0 : index
      %c0_27 = arith.constant 0 : index
      %50 = vector.load %arg7[%c0_26, %c0_27] : memref<8x1xf32, #tpu.memory_space<vmem>>, vector<8x1xf32>
      %51 = arith.subf %49, %50 : vector<8x1xf32>
      %cst_28 = arith.constant 0.000000e+00 : f32
      %52 = vector.broadcast %cst_28 : f32 to vector<8x1xf32>
      %53 = arith.select %45, %51, %52 : vector<8x1xi1>, vector<8x1xf32>
      %54 = vector.shape_cast %53 : vector<8x1xf32> to vector<1x8x1xf32>
      %cst_29 = arith.constant dense<0.000000e+00> : vector<1xf32>
      %55 = vector.multi_reduction <add>, %54, %cst_29 [1, 2] : vector<1x8x1xf32> to vector<1xf32>
      %56 = vector.shape_cast %55 : vector<1xf32> to vector<1x1x1xf32>
      %57 = vector.extract %56[0, 0, 0] : f32 from vector<1x1x1xf32>
      %58 = arith.extui %45 : vector<8x1xi1> to vector<8x1xi32>
      %59 = arith.sitofp %58 : vector<8x1xi32> to vector<8x1xf32>
      %60 = vector.shape_cast %59 : vector<8x1xf32> to vector<1x8x1xf32>
      %cst_30 = arith.constant dense<0.000000e+00> : vector<1xf32>
      %61 = vector.multi_reduction <add>, %60, %cst_30 [1, 2] : vector<1x8x1xf32> to vector<1xf32>
      %62 = vector.shape_cast %61 : vector<1xf32> to vector<1x1x1xf32>
      %63 = vector.extract %62[0, 0, 0] : f32 from vector<1x1x1xf32>
      %64 = tpu.iota {dimensions = array<i32: 1>} : vector<1x8x128xi32>
      %c0_i32_31 = arith.constant 0 : i32
      %65 = vector.broadcast %c0_i32_31 : i32 to vector<1x8x128xi32>
      %66 = arith.cmpi eq, %64, %65 : vector<1x8x128xi32>
      %c1_i32 = arith.constant 1 : i32
      %67 = vector.broadcast %c1_i32 : i32 to vector<1x8x128xi32>
      %68 = arith.cmpi eq, %64, %67 : vector<1x8x128xi32>
      %cst_32 = arith.constant 0.000000e+00 : f32
      %69 = vector.broadcast %63 : f32 to vector<1x8x128xf32>
      %70 = vector.broadcast %cst_32 : f32 to vector<1x8x128xf32>
      %71 = arith.select %68, %69, %70 : vector<1x8x128xi1>, vector<1x8x128xf32>
      %72 = vector.broadcast %57 : f32 to vector<1x8x128xf32>
      %73 = arith.select %66, %72, %71 : vector<1x8x128xi1>, vector<1x8x128xf32>
      %c0_33 = arith.constant 0 : index
      %c0_34 = arith.constant 0 : index
      %c0_35 = arith.constant 0 : index
      %74 = vector.load %arg4[%c0_33, %c0_34, %c0_35] : memref<1x8x128xf32, #tpu.memory_space<vmem>>, vector<1x8x128xf32>
      tpu.vector_store %arg4[%c0_33, %c0_34, %c0_35], %73 {strides = array<i32>} : memref<1x8x128xf32, #tpu.memory_space<vmem>>, vector<1x8x128xf32>,
    } else {
    }
    return
  }
  func.func @transform_0(%arg0: i32, %arg1: i32) -> (i32, i32) {
    %c0_i32 = arith.constant 0 : i32
    return %arg0, %arg1 : i32, i32
  }
  func.func @transform_1(%arg0: i32, %arg1: i32) -> (i32, i32) {
    %c0_i32 = arith.constant 0 : i32
    %c0_i32_0 = arith.constant 0 : i32
    return %arg0, %c0_i32 : i32, i32
  }
  func.func @transform_2(%arg0: i32, %arg1: i32) -> (i32, i32, i32) {
    %c0_i32 = arith.constant 0 : i32
    %c0_i32_0 = arith.constant 0 : i32
    %c0_i32_1 = arith.constant 0 : i32
    return %arg0, %c0_i32, %c0_i32_0 : i32, i32, i32
  }
}

</mosaic_0001>

<llo_original>
// kernel: tpu_custom_call.1
$region0: #{tpu_custom_call.1}
  #allocation0 [shape = 'u32[]', space=smem, size = 0x4, offset = 0x4, fixed_abs, tag = 'smem constant byte address 0x4 - core index']
  #allocation1 [shape = 'u32[72,128]{1,0:T(1,128)}', space=vmem, size = 0x9000, scoped, tag = 'internal scratch']
  #allocation2 [shape = 'f32[8,1]{1,0:T(8,128)}', space=vmem, size = 0x1000, scoped, tag = 'scratch operand']
  #allocation3 [shape = 'f32[8,1]{1,0:T(8,128)}', space=vmem, size = 0x1000, scoped, tag = 'scratch operand']
  #allocation4 [shape = 'f32[8,1]{1,0:T(8,128)}', space=vmem, size = 0x1000, scoped, tag = 'scratch operand']
  %s0 = inlined_call_operand.hbm [shape: f32[10,32], index: 0, kind: input, shape index: {}]
  %s1 = inlined_call_operand.vmem [shape: s32[8,1], index: 1, kind: input, shape index: {}]
  %s2 = inlined_call_operand.hbm [shape: f32[1,8,128], index: 2, kind: output, shape index: {}]
  %s3 = sld [smem:[#allocation0]]
  $region30: #{tpu_custom_call.1} parent=0
    _
  %s5 = ssub.s32 1, %s3
  %s6 = scalar_select 0, %s5, %s3
  $region1: #{tpu_custom_call.1} parent=0
    #allocation5 [shape = 'u8[4096]{0}', space=vmem, size = 0x1000, scoped, tag = 'input window, operand 0, single buffered']
    #allocation6 [shape = 's32[1]{0}', space=sflag, size = 0x4, scoped, tag = 'scoped memory for tpu_custom_call.1']
    #allocation7 [shape = 's32[1]{0}', space=sflag, size = 0x4, scoped, tag = 'scoped memory for tpu_custom_call.1']
    #allocation8 [shape = 'u8[4096]{0}', space=vmem, size = 0x1000, scoped, tag = 'output window, operand 0, single buffered']
    %7 = vsyncpa [#allocation6], 0
    %8 = vsyncpa [#allocation7], 0
    // Predicated region
    $region2: #{tpu_custom_call.1} parent=1 // pred_check
      _
    $region3: #{tpu_custom_call.1} parent=1 // pred_check_branch
      %10 = sbr.rel (0) target = $region5
    $region4: #{tpu_custom_call.1} parent=1 // pred_region
      %12 = vsyncadd [#allocation6], 0
      %s14 = sshll.u32 %s0, 4
      %s15 = int_to_ptr.hbm [resolvable:$true] %s14
      %s16 = sshll.u32 [#allocation5], 4
      %s17 = int_to_ptr.vmem [resolvable:$true] %s16
      %19 = dma.hbm_to_vmem [thread:$0]  %s15, 128, %s17, [#allocation6]
    $region5: #{tpu_custom_call.1} parent=1 // pred_fallthru
      _
    // Predicated region
    $region6: #{tpu_custom_call.1} parent=1 // pred_check
      _
    $region7: #{tpu_custom_call.1} parent=1 // pred_check_branch
      %21 = sbr.rel (0) target = $region9
    $region8: #{tpu_custom_call.1} parent=1 // pred_region
      _
    $region9: #{tpu_custom_call.1} parent=1 // pred_fallthru
      _
    // Predicated region
    $region10: #{tpu_custom_call.1} parent=1 // pred_check
      _
    $region11: #{tpu_custom_call.1} parent=1 // pred_check_branch
      %23 = sbr.rel (0) target = $region13
    $region12: #{tpu_custom_call.1} parent=1 // pred_region
      %25 = dma.done [#allocation6], 128
    $region13: #{tpu_custom_call.1} parent=1 // pred_fallthru
      _
    %p26 = scmp.eq.s32.totalorder 0, 0
    // Predicated region
    $region14: #{tpu_custom_call.1} parent=1 // pred_check
      %p27 = pneg %p26
    $region15: #{tpu_custom_call.1} parent=1 // pred_check_branch
      %29 = sbr.rel (%p27) target = $region17
    $region16: #{tpu_custom_call.1} parent=1 // pred_region
      %vm30 = vcmask 7168
      %31 = vst.msk [vmem:[#allocation2] sm:$0xff] %vm30, -inf
      %32 = vst.msk [vmem:[#allocation3] sm:$0xff] %vm30, 0.0
      %33 = vst.msk [vmem:[#allocation4] sm:$0xff] %vm30, 0.0
    $region17: #{tpu_custom_call.1} parent=1 // pred_fallthru
      _
    %v34 = vld [vmem:[#allocation5] sm:$0xff]
    %v35 = vld [vmem:[%s1] sm:$0xff]
    %v36 = vlaneseq
    %v37 = vand.u32 %v36, 127
    %s38 = smul.u32 0, 32
    %v39 = vstv %s38
    %v40 = vsub.s32 %v35, %v39
    %41 = vset.pattern.permute.xlu0 0
    %42 = vperm.xlu0 %41, %v40
    %v43 = vpop.permute.xlu0 %42
    %vm44 = vcmp.eq.s32.totalorder %v37, %v43
    %v45 = vsel %vm44, %v34, 0.0
    %vm46 = vcmask 261120
    %v47 = vsel %vm46, %v45, 0.0
    %48 = vadd.xlane.f32.xlu0 %v47
    %v49 = vpop.xlane.xlu0 %48
    %v50 = vld [vmem:[#allocation4] sm:$0xff]
    %v51 = vadd.f32 %v50, %v49
    %vm52 = vcmask 7168
    %53 = vst.msk [vmem:[#allocation4] sm:$0xff] %vm52, %v51
    %v54 = vld [vmem:[#allocation2] sm:$0xff]
    %v55 = vsel %vm46, %v34, -inf
    %56 = vmax.xlane.f32.xlu0 %v55
    %v57 = vpop.xlane.xlu0 %56
    %v58 = vmax.f32 %v54, %v57
    %v59 = vld [vmem:[#allocation3] sm:$0xff]
    %v60 = vsub.f32 %v54, %v58
    %v61 = vmul.f32 %v60, 1.442695
    %v62 = vpow.pop %v61
    %v63 = vmul.f32 %v59, %v62
    %65 = vset.pattern.permute.xlu0 0
    %66 = vperm.xlu0 %65, %v58
    %v67 = vpop.permute.xlu0 %66
    %v69 = vsub.f32 %v34, %v67
    %v70 = vmul.f32 %v69, 1.442695
    %v71 = vpow.pop %v70
    %v72 = vsel %vm46, %v71, 0.0
    %73 = vadd.xlane.f32.xlu0 %v72
    %v74 = vpop.xlane.xlu0 %73
    %v75 = vadd.f32 %v63, %v74
    %76 = vst.msk [vmem:[#allocation3] sm:$0xff] %vm52, %v75
    %77 = vst.msk [vmem:[#allocation2] sm:$0xff] %vm52, %v58
    // Predicated region
    $region18: #{tpu_custom_call.1} parent=1 // pred_check
      %p78 = pneg %p26
    $region19: #{tpu_custom_call.1} parent=1 // pred_check_branch
      %80 = sbr.rel (%p78) target = $region21
    $region20: #{tpu_custom_call.1} parent=1 // pred_region
      %v81 = vlaneseq
      %v82 = vshrl.u32 %v81, 7
      %s83 = smul.u32 0, 8
      %v84 = vstv %s83
      %v85 = vadd.s32 %v82, %v84
      %vm86 = vcmp.ne.s32.totalorder %v35, 4294967196
      %vm87 = vcmp.lt.s32.totalorder %v85, 8
      %vm88 = vmand %vm86, %vm87
      %v89 = vld [vmem:[#allocation2] sm:$0xff]
      %v90 = vld [vmem:[#allocation3] sm:$0xff]
      %v91 = vlog2.pop %v90
      %v92 = vmul.f32 %v91, 0.6931472
      %v93 = vadd.f32 %v89, %v92
      %v94 = vld [vmem:[#allocation4] sm:$0xff]
      %v95 = vsub.f32 %v93, %v94
      %v96 = vsel %vm88, %v95, 0.0
      %v97 = vsel %vm52, %v96, 0.0
      %98 = vadd.xlane.f32.xlu0 %v97
      %v99 = vpop.xlane.xlu0 %98
      %v100 = vrot.slane %v99, 4
      %v101 = vadd.f32 %v99, %v100
      %v102 = vrot.slane %v101, 2
      %v103 = vadd.f32 %v101, %v102
      %v104 = vrot.slane %v103, 1
      %v105 = vadd.f32 %v103, %v104
      %s106 = vtos %v105
      %v107 = vsel %vm88, 1, 0
      %v108 = vcvt.s32.f32 %v107
      %v109 = vsel %vm52, %v108, 0.0
      %110 = vadd.xlane.f32.xlu0 %v109
      %v111 = vpop.xlane.xlu0 %110
      %v112 = vrot.slane %v111, 4
      %v113 = vadd.f32 %v111, %v112
      %v114 = vrot.slane %v113, 2
      %v115 = vadd.f32 %v113, %v114
      %v116 = vrot.slane %v115, 1
      %v117 = vadd.f32 %v115, %v116
      %s118 = vtos %v117
      %vm119 = vcmp.eq.s32.totalorder %v82, 0
      %vm120 = vcmp.eq.s32.totalorder %v82, 1
      %v121 = vstv %s118
      %v122 = vsel %vm120, %v121, 0.0
      %v123 = vstv %s106
      %v124 = vsel %vm119, %v123, %v122
      %125 = vst [vmem:[#allocation8] sm:$0xff] %v124
    $region21: #{tpu_custom_call.1} parent=1 // pred_fallthru
      _
    // Predicated region
    $region22: #{tpu_custom_call.1} parent=1 // pred_check
      _
    $region23: #{tpu_custom_call.1} parent=1 // pred_check_branch
      %127 = sbr.rel (0) target = $region25
    $region24: #{tpu_custom_call.1} parent=1 // pred_region
      %129 = vsyncadd [#allocation7], 0
      %s131 = sshll.u32 [#allocation8], 4
      %s132 = int_to_ptr.vmem [resolvable:$true] %s131
      %s133 = sshll.u32 %s2, 4
      %s134 = int_to_ptr.hbm [resolvable:$true] %s133
      %136 = dma.vmem_to_hbm [thread:$0]  %s132, 128, %s134, [#allocation7]
    $region25: #{tpu_custom_call.1} parent=1 // pred_fallthru
      _
    // Predicated region
    $region26: #{tpu_custom_call.1} parent=1 // pred_check
      _
    $region27: #{tpu_custom_call.1} parent=1 // pred_check_branch
      %138 = sbr.rel (0) target = $region29
    $region28: #{tpu_custom_call.1} parent=1 // pred_region
      %140 = dma.done [#allocation7], 128
    $region29: #{tpu_custom_call.1} parent=1 // pred_fallthru
      _
    %141 = vsyncpa [#allocation6], 1
    %142 = vsyncpa [#allocation7], 1

</llo_original>
